<compile_context>
chip_gen: v5e
topology: v5e:2x2
jax: 0.10.0
libtpu: 0.0.40
codegen_flags: <defaults>
</compile_context>

<pallas_src>
import functools

import jax
import jax.numpy as jnp
from jax.experimental import pallas as pl
from jax.experimental.pallas import tpu as pltpu


def _round_up(x, m):
    return (x + m - 1) // m * m


def _cdiv(a, b):
    return (a + b - 1) // b


def _physical_vmem_bytes():
    try:
        fn = getattr(pltpu, "get_tpu_info", None)
        if fn is not None:
            v = getattr(fn(), "vmem_capacity_bytes", None)
            if v:
                return int(v)
    except Exception:
        pass
    return 64 << 20  # conservative fallback (v7x per-TC VMEM)


def prepare_ffn_params(w1, b1, w2, b2, gamma, beta, weight_dtype=jnp.bfloat16):
    """One-time parameter prep (call once, NOT per step): transpose + cast.

    w1: (4H, H), w2: (H, 4H) in the PyTorch nn.Linear layout.
    Returns (w1t (H,4H), b1 (1,4H) f32, w2t (4H,H), b2/gamma/beta (1,H) f32).
    """
    w_dt = jnp.dtype(weight_dtype) if weight_dtype is not None else jnp.asarray(w1).dtype
    return (jnp.asarray(w1).T.astype(w_dt),
            jnp.asarray(b1).reshape(1, -1).astype(jnp.float32),
            jnp.asarray(w2).T.astype(w_dt),
            jnp.asarray(b2).reshape(1, -1).astype(jnp.float32),
            jnp.asarray(gamma).reshape(1, -1).astype(jnp.float32),
            jnp.asarray(beta).reshape(1, -1).astype(jnp.float32))


def _ffn_kernel(x_ref, w1_ref, b1_ref, w2_ref, b2_ref, g_ref, beta_ref,
                o_ref, *scratch, eps, acc_in_out, cast_x):
    j = pl.program_id(1)
    nj = pl.num_programs(1)

    si = 0
    if acc_in_out:
        acc_ref = o_ref                    # f32 output block doubles as accumulator
    else:
        acc_ref = scratch[si]
        si += 1

    if cast_x:
        xc_ref = scratch[si]

        @pl.when(j == 0)
        def _():
            xc_ref[...] = x_ref[...].astype(xc_ref.dtype)

        x_in = xc_ref[...]
    else:
        x_in = x_ref[...].astype(w1_ref.dtype)

    # ---- first linear chunk + ReLU: (tile_m, tn), f32 accumulation --------
    h = jnp.dot(x_in, w1_ref[...], preferred_element_type=jnp.float32)
    h = jnp.maximum(h + b1_ref[...], 0.0)

    # ---- second linear: this chunk's partial (tile_m, H) contribution -----
    part = jnp.dot(h.astype(w2_ref.dtype), w2_ref[...],
                   preferred_element_type=jnp.float32)

    @pl.when(j == 0)
    def _():
        acc_ref[...] = part.astype(acc_ref.dtype)

    @pl.when(j > 0)
    def _():
        acc_ref[...] += part.astype(acc_ref.dtype)

    # ---- finalize on last reduction step: residual + LayerNorm ------------
    @pl.when(j == nj - 1)
    def _():
        y = acc_ref[...].astype(jnp.float32) + b2_ref[...] + x_ref[...].astype(jnp.float32)
        mean = jnp.mean(y, axis=-1, keepdims=True)
        c = y - mean
        var = jnp.mean(c * c, axis=-1, keepdims=True)
        out = c * jax.lax.rsqrt(var + eps)
        out = out * g_ref[...] + beta_ref[...]
        o_ref[...] = out.astype(o_ref.dtype)


def feed_forward(x, w1t, b1, w2t, b2, gamma, beta, *, eps=1e-8,
                 tile_m=None, tn=None):
    """x: (N, H). Parameters must already be prepared via prepare_ffn_params."""
    N, H = x.shape
    H4 = w1t.shape[1]
    assert w1t.shape == (H, H4) and w2t.shape == (H4, H)
    assert b1.shape == (1, H4) and b2.shape == (1, H)

    x_dt = jnp.dtype(x.dtype)
    w_dt = jnp.dtype(w1t.dtype)
    xb = x_dt.itemsize
    wb = w_dt.itemsize
    acc_in_out = (x_dt == jnp.float32)      # reuse resident f32 output block as accumulator
    min_tm = 16 if xb == 2 else 8

    budget = _physical_vmem_bytes() - (8 << 20)   # headroom for compiler scratch

    # ---- tile_m ------------------------------------------------------------
    if tile_m is None:
        tm = min(512, _round_up(N, min_tm))
        # make sure the "parallel" M axis has >=2 tiles so both v7x TCs get work
        if _cdiv(N, tm) == 1 and N > min_tm:
            tm = _round_up(_cdiv(N, 2), min_tm)
    else:
        tm = _round_up(max(min_tm, min(tile_m, _round_up(N, min_tm))), min_tm)

    # ---- tn (4H chunk): multiples of 128 dividing 4H, or the full 4H -------
    cands = sorted({t for t in range(128, H4 + 1, 128) if H4 % t == 0} | {H4})
    if tn is not None:
        if tn not in cands:
            raise ValueError(
                f"tn={tn} must divide 4H={H4} and be a multiple of 128 (or equal 4H)")
        pref = [tn]
    else:
        others = [c for c in cands if c != H4]
        pref = ([H4]                                           # weight-resident first
                + sorted([c for c in others if c <= 512], reverse=True)
                + sorted([c for c in others if c > 512]))

    def usage(tm_, tn_):
        nj = H4 // tn_
        cx = (w_dt != x_dt) and nj > 1
        b = 2 * 2 * tm_ * H * xb              # x + out blocks (double buffered)
        b += 2 * 2 * H * tn_ * wb             # W1^T / W2^T chunks (double buffered)
        b += 2 * 8 * (tn_ + 3 * H) * 4        # b1, b2, gamma, beta (sublane padded)
        if not acc_in_out:
            b += tm_ * H * 4                  # f32 accumulator scratch
        if cx:
            b += tm_ * H * wb                 # hoisted x cast scratch
        return b, cx

    sel = None
    while True:
        sel = next((t for t in pref if usage(tm, t)[0] <= budget), None)
        if sel is not None or tm <= min_tm:
            break
        tm = max(min_tm, _round_up(tm // 2, min_tm))
    if sel is None:
        sel = min(cands)                      # smallest footprint fallback

    vbytes, cast_x = usage(tm, sel)
    grid = (_cdiv(N, tm), H4 // sel)

    scratch_shapes = []
    if not acc_in_out:
        scratch_shapes.append(pltpu.VMEM((tm, H), jnp.float32))
    if cast_x:
        scratch_shapes.append(pltpu.VMEM((tm, H), w_dt))

    # Never request more than the physical VMEM (v7x = 64 MiB) minus headroom.
    vmem_limit = int(min(budget + (4 << 20), max(vbytes + (8 << 20), 32 << 20)))

    kernel = functools.partial(_ffn_kernel, eps=eps,
                               acc_in_out=acc_in_out, cast_x=cast_x)

    return pl.pallas_call(
        kernel,
        out_shape=jax.ShapeDtypeStruct((N, H), x.dtype),
        grid_spec=pltpu.PrefetchScalarGridSpec(
            num_scalar_prefetch=0,
            grid=grid,
            in_specs=[
                pl.BlockSpec((tm, H), lambda i, j: (i, 0)),     # x tile
                pl.BlockSpec((H, sel), lambda i, j: (0, j)),    # W1^T chunk
                pl.BlockSpec((1, sel), lambda i, j: (0, j)),    # b1 chunk
                pl.BlockSpec((sel, H), lambda i, j: (j, 0)),    # W2^T chunk
                pl.BlockSpec((1, H), lambda i, j: (0, 0)),      # b2
                pl.BlockSpec((1, H), lambda i, j: (0, 0)),      # gamma
                pl.BlockSpec((1, H), lambda i, j: (0, 0)),      # beta
            ],
            out_specs=pl.BlockSpec((tm, H), lambda i, j: (i, 0)),
            scratch_shapes=scratch_shapes,
        ),
        compiler_params=pltpu.CompilerParams(
            dimension_semantics=("parallel", "arbitrary"),
            vmem_limit_bytes=vmem_limit),
    )(x, w1t, b1, w2t, b2, gamma, beta)


def _reference(x, w1, b1, w2, b2, gamma, beta, eps=1e-8):
    x = x.astype(jnp.float32)
    h = jax.nn.relu(x @ w1.T + b1)
    y = h @ w2.T + b2 + x
    mean = y.mean(-1, keepdims=True)
    var = ((y - mean) ** 2).mean(-1, keepdims=True)
    return (y - mean) / jnp.sqrt(var + eps) * gamma + beta


if __name__ == "__main__":
    ffn = jax.jit(feed_forward, static_argnames=("eps", "tile_m", "tn"))

    def make_case(key, hidden, x_dtype):
        batch, seq = 2, 8
        ks = jax.random.split(key, 7)
        x = jax.random.normal(ks[0], (batch, seq, hidden), jnp.float32).astype(x_dtype)
        w1 = jax.random.normal(ks[1], (4 * hidden, hidden), jnp.float32) * 0.05
        b1 = jax.random.normal(ks[2], (4 * hidden,), jnp.float32) * 0.05
        w2 = jax.random.normal(ks[3], (hidden, 4 * hidden), jnp.float32) * 0.05
        b2 = jax.random.normal(ks[4], (hidden,), jnp.float32) * 0.05
        gamma = 1.0 + 0.1 * jax.random.normal(ks[5], (hidden,), jnp.float32)
        beta = 0.1 * jax.random.normal(ks[6], (hidden,), jnp.float32)
        return x, (w1, b1, w2, b2, gamma, beta)

    def run_case(key, hidden, x_dtype, weight_dtype, tn, atol):
        x, (w1, b1, w2, b2, gamma, beta) = make_case(key, hidden, x_dtype)
        params = prepare_ffn_params(w1, b1, w2, b2, gamma, beta,
                                    weight_dtype=weight_dtype)
        x2d = x.reshape(-1, hidden)
        out = ffn(x2d, *params, tn=tn)
        jax.block_until_ready(out)
        out = out.reshape(x.shape).astype(jnp.float32)
        ref = _reference(x, w1, b1, w2, b2, gamma, beta)
        assert jnp.allclose(out, ref, atol=atol, rtol=atol), (
            f"mismatch (hidden={hidden}, x={x_dtype}, w={weight_dtype}): "
            f"max err {jnp.max(jnp.abs(out - ref))}")

    key = jax.random.PRNGKey(0)
    k1, k2, k3 = jax.random.split(key, 3)

    # 1) Spec shape (hidden=32), f32 weights: exact-math path, weight-resident,
    #    single reduction step, 2 M tiles, accumulate-into-output.
    run_case(k1, 32, jnp.float32, jnp.float32, None, 1e-4)
    # 2) Streaming path: bf16 weights, 4H split into 2 chunks (tn=128),
    #    multiple M tiles, hoisted x->bf16 cast scratch.
    run_case(k2, 64, jnp.float32, jnp.bfloat16, 128, 5e-2)
    # 3) bf16 activations: separate f32 accumulator scratch, 16-row min tile,
    #    multi-step reduction.
    run_case(k3, 64, jnp.bfloat16, jnp.bfloat16, 128, 1e-1)

    print("KERNEL_OK")
</pallas_src>

<mosaic_0001>
module attributes {stable_mosaic.version = 11 : i64} {
  func.func @_ffn_kernel(%arg0: i32, %arg1: i32, %arg2: memref<8x32xf32, #tpu.memory_space<vmem>>, %arg3: memref<32x128xf32, #tpu.memory_space<vmem>>, %arg4: memref<1x128xf32, #tpu.memory_space<vmem>>, %arg5: memref<128x32xf32, #tpu.memory_space<vmem>>, %arg6: memref<1x32xf32, #tpu.memory_space<vmem>>, %arg7: memref<1x32xf32, #tpu.memory_space<vmem>>, %arg8: memref<1x32xf32, #tpu.memory_space<vmem>>, %arg9: memref<8x32xf32, #tpu.memory_space<vmem>>) attributes {dimension_semantics = [#tpu.dimension_semantics<parallel>, #tpu.dimension_semantics<arbitrary>], iteration_bounds = array<i64: 2, 1>, scalar_prefetch = 0 : i64, scratch_operands = 0 : i64, tpu.core_type = #tpu.core_type<tc>, window_params = [{transform_indices = @transform_0, window_bounds = array<i64: 8, 32>}, {transform_indices = @transform_1, window_bounds = array<i64: 32, 128>}, {transform_indices = @transform_2, window_bounds = array<i64: 1, 128>}, {transform_indices = @transform_3, window_bounds = array<i64: 128, 32>}, {pipeline_mode = #tpu.pipeline_mode<synchronous>, transform_indices = @transform_4, window_bounds = array<i64: 1, 32>}, {pipeline_mode = #tpu.pipeline_mode<synchronous>, transform_indices = @transform_5, window_bounds = array<i64: 1, 32>}, {pipeline_mode = #tpu.pipeline_mode<synchronous>, transform_indices = @transform_6, window_bounds = array<i64: 1, 32>}, {transform_indices = @transform_7, window_bounds = array<i64: 8, 32>}]} {
    %c0 = arith.constant 0 : index
    %c0_0 = arith.constant 0 : index
    %0 = vector.load %arg2[%c0, %c0_0] : memref<8x32xf32, #tpu.memory_space<vmem>>, vector<8x32xf32>
    %c0_1 = arith.constant 0 : index
    %c0_2 = arith.constant 0 : index
    %1 = vector.load %arg3[%c0_1, %c0_2] : memref<32x128xf32, #tpu.memory_space<vmem>>, vector<32x128xf32>
    %cst = arith.constant dense<0.000000e+00> : vector<8x128xf32>
    %2 = tpu.matmul %0, %1, %cst {dimension_numbers = #tpu.dot_dimension_numbers<[1], [0], [0], [1], [0, 0, 1, 1], [], []>} : vector<8x32xf32>, vector<32x128xf32>, vector<8x128xf32> -> vector<8x128xf32>
    %c0_3 = arith.constant 0 : index
    %c0_4 = arith.constant 0 : index
    %3 = vector.load %arg4[%c0_3, %c0_4] : memref<1x128xf32, #tpu.memory_space<vmem>>, vector<1x128xf32>
    %4 = vector.broadcast %3 : vector<1x128xf32> to vector<8x128xf32>
    %5 = arith.addf %2, %4 : vector<8x128xf32>
    %cst_5 = arith.constant 0.000000e+00 : f32
    %6 = vector.broadcast %cst_5 : f32 to vector<8x128xf32>
    %7 = arith.maximumf %5, %6 : vector<8x128xf32>
    %c0_6 = arith.constant 0 : index
    %c0_7 = arith.constant 0 : index
    %8 = vector.load %arg5[%c0_6, %c0_7] : memref<128x32xf32, #tpu.memory_space<vmem>>, vector<128x32xf32>
    %cst_8 = arith.constant dense<0.000000e+00> : vector<8x32xf32>
    %9 = tpu.matmul %7, %8, %cst_8 {dimension_numbers = #tpu.dot_dimension_numbers<[1], [0], [0], [1], [0, 0, 1, 1], [], []>} : vector<8x128xf32>, vector<128x32xf32>, vector<8x32xf32> -> vector<8x32xf32>
    %c0_i32 = arith.constant 0 : i32
    %10 = arith.cmpi eq, %arg1, %c0_i32 : i32
    %11 = arith.extui %10 : i1 to i32
    %c0_i32_9 = arith.constant 0 : i32
    %12 = arith.cmpi ne, %11, %c0_i32_9 : i32
    scf.if %12 {
      %c0_14 = arith.constant 0 : index
      %c0_15 = arith.constant 0 : index
      %19 = vector.load %arg9[%c0_14, %c0_15] : memref<8x32xf32, #tpu.memory_space<vmem>>, vector<8x32xf32>
      tpu.vector_store %arg9[%c0_14, %c0_15], %9 {strides = array<i32>} : memref<8x32xf32, #tpu.memory_space<vmem>>, vector<8x32xf32>,
    } else {
    }
    %c0_i32_10 = arith.constant 0 : i32
    %13 = arith.cmpi sgt, %arg1, %c0_i32_10 : i32
    %14 = arith.extui %13 : i1 to i32
    %c0_i32_11 = arith.constant 0 : i32
    %15 = arith.cmpi ne, %14, %c0_i32_11 : i32
    scf.if %15 {
      %c0_14 = arith.constant 0 : index
      %c0_15 = arith.constant 0 : index
      %19 = vector.load %arg9[%c0_14, %c0_15] : memref<8x32xf32, #tpu.memory_space<vmem>>, vector<8x32xf32>
      %20 = arith.addf %19, %9 : vector<8x32xf32>
      %c0_16 = arith.constant 0 : index
      %c0_17 = arith.constant 0 : index
      %21 = vector.load %arg9[%c0_16, %c0_17] : memref<8x32xf32, #tpu.memory_space<vmem>>, vector<8x32xf32>
      tpu.vector_store %arg9[%c0_16, %c0_17], %20 {strides = array<i32>} : memref<8x32xf32, #tpu.memory_space<vmem>>, vector<8x32xf32>,
    } else {
    }
    %c0_i32_12 = arith.constant 0 : i32
    %16 = arith.cmpi eq, %arg1, %c0_i32_12 : i32
    %17 = arith.extui %16 : i1 to i32
    %c0_i32_13 = arith.constant 0 : i32
    %18 = arith.cmpi ne, %17, %c0_i32_13 : i32
    scf.if %18 {
      %c0_14 = arith.constant 0 : index
      %c0_15 = arith.constant 0 : index
      %19 = vector.load %arg9[%c0_14, %c0_15] : memref<8x32xf32, #tpu.memory_space<vmem>>, vector<8x32xf32>
      %c0_16 = arith.constant 0 : index
      %c0_17 = arith.constant 0 : index
      %20 = vector.load %arg6[%c0_16, %c0_17] : memref<1x32xf32, #tpu.memory_space<vmem>>, vector<1x32xf32>
      %21 = vector.broadcast %20 : vector<1x32xf32> to vector<8x32xf32>
      %22 = arith.addf %19, %21 : vector<8x32xf32>
      %c0_18 = arith.constant 0 : index
      %c0_19 = arith.constant 0 : index
      %23 = vector.load %arg2[%c0_18, %c0_19] : memref<8x32xf32, #tpu.memory_space<vmem>>, vector<8x32xf32>
      %24 = arith.addf %22, %23 : vector<8x32xf32>
      %cst_20 = arith.constant dense<0.000000e+00> : vector<8xf32>
      %25 = vector.multi_reduction <add>, %24, %cst_20 [1] : vector<8x32xf32> to vector<8xf32>
      %26 = vector.shape_cast %25 : vector<8xf32> to vector<8x1xf32>
      %cst_21 = arith.constant 3.200000e+01 : f32
      %27 = vector.broadcast %cst_21 : f32 to vector<8x1xf32>
      %28 = arith.divf %26, %27 : vector<8x1xf32>
      %29 = vector.broadcast %28 : vector<8x1xf32> to vector<8x32xf32>
      %30 = arith.subf %24, %29 : vector<8x32xf32>
      %31 = arith.mulf %30, %30 : vector<8x32xf32>
      %cst_22 = arith.constant dense<0.000000e+00> : vector<8xf32>
      %32 = vector.multi_reduction <add>, %31, %cst_22 [1] : vector<8x32xf32> to vector<8xf32>
      %33 = vector.shape_cast %32 : vector<8xf32> to vector<8x1xf32>
      %cst_23 = arith.constant 3.200000e+01 : f32
      %34 = vector.broadcast %cst_23 : f32 to vector<8x1xf32>
      %35 = arith.divf %33, %34 : vector<8x1xf32>
      %cst_24 = arith.constant 9.99999993E-9 : f32
      %36 = vector.broadcast %cst_24 : f32 to vector<8x1xf32>
      %37 = arith.addf %35, %36 : vector<8x1xf32>
      %38 = math.rsqrt %37 : vector<8x1xf32>
      %39 = vector.broadcast %38 : vector<8x1xf32> to vector<8x32xf32>
      %40 = arith.mulf %30, %39 : vector<8x32xf32>
      %c0_25 = arith.constant 0 : index
      %c0_26 = arith.constant 0 : index
      %41 = vector.load %arg7[%c0_25, %c0_26] : memref<1x32xf32, #tpu.memory_space<vmem>>, vector<1x32xf32>
      %42 = vector.broadcast %41 : vector<1x32xf32> to vector<8x32xf32>
      %43 = arith.mulf %40, %42 : vector<8x32xf32>
      %c0_27 = arith.constant 0 : index
      %c0_28 = arith.constant 0 : index
      %44 = vector.load %arg8[%c0_27, %c0_28] : memref<1x32xf32, #tpu.memory_space<vmem>>, vector<1x32xf32>
      %45 = vector.broadcast %44 : vector<1x32xf32> to vector<8x32xf32>
      %46 = arith.addf %43, %45 : vector<8x32xf32>
      %c0_29 = arith.constant 0 : index
      %c0_30 = arith.constant 0 : index
      %47 = vector.load %arg9[%c0_29, %c0_30] : memref<8x32xf32, #tpu.memory_space<vmem>>, vector<8x32xf32>
      tpu.vector_store %arg9[%c0_29, %c0_30], %46 {strides = array<i32>} : memref<8x32xf32, #tpu.memory_space<vmem>>, vector<8x32xf32>,
    } else {
    }
    return
  }
  func.func @transform_0(%arg0: i32, %arg1: i32) -> (i32, i32) {
    %c0_i32 = arith.constant 0 : i32
    %c0_i32_0 = arith.constant 0 : i32
    return %arg0, %c0_i32 : i32, i32
  }
  func.func @transform_1(%arg0: i32, %arg1: i32) -> (i32, i32) {
    %c0_i32 = arith.constant 0 : i32
    %c0_i32_0 = arith.constant 0 : i32
    return %c0_i32, %arg1 : i32, i32
  }
  func.func @transform_2(%arg0: i32, %arg1: i32) -> (i32, i32) {
    %c0_i32 = arith.constant 0 : i32
    %c0_i32_0 = arith.constant 0 : i32
    return %c0_i32, %arg1 : i32, i32
  }
  func.func @transform_3(%arg0: i32, %arg1: i32) -> (i32, i32) {
    %c0_i32 = arith.constant 0 : i32
    %c0_i32_0 = arith.constant 0 : i32
    return %arg1, %c0_i32 : i32, i32
  }
  func.func @transform_4(%arg0: i32, %arg1: i32) -> (i32, i32) {
    %c0_i32 = arith.constant 0 : i32
    %c0_i32_0 = arith.constant 0 : i32
    %c0_i32_1 = arith.constant 0 : i32
    return %c0_i32, %c0_i32_0 : i32, i32
  }
  func.func @transform_5(%arg0: i32, %arg1: i32) -> (i32, i32) {
    %c0_i32 = arith.constant 0 : i32
    %c0_i32_0 = arith.constant 0 : i32
    %c0_i32_1 = arith.constant 0 : i32
    return %c0_i32, %c0_i32_0 : i32, i32
  }
  func.func @transform_6(%arg0: i32, %arg1: i32) -> (i32, i32) {
    %c0_i32 = arith.constant 0 : i32
    %c0_i32_0 = arith.constant 0 : i32
    %c0_i32_1 = arith.constant 0 : i32
    return %c0_i32, %c0_i32_0 : i32, i32
  }
  func.func @transform_7(%arg0: i32, %arg1: i32) -> (i32, i32) {
    %c0_i32 = arith.constant 0 : i32
    %c0_i32_0 = arith.constant 0 : i32
    return %arg0, %c0_i32 : i32, i32
  }
}

</mosaic_0001>

<llo_original>
// kernel: feed_forward.1
$region0: #{feed_forward.1}
  #allocation0 [shape = 'u32[]', space=smem, size = 0x4, offset = 0x4, fixed_abs, tag = 'smem constant byte address 0x4 - core index']
  #allocation1 [shape = 'u32[72,128]{1,0:T(1,128)}', space=vmem, size = 0x9000, scoped, tag = 'internal scratch']
  %s0 = inlined_call_operand.vmem [shape: f32[16,32], index: 0, kind: input, shape index: {}]
  %s1 = inlined_call_operand.vmem [shape: f32[32,128], index: 1, kind: input, shape index: {}]
  %s2 = inlined_call_operand.vmem [shape: f32[1,128], index: 2, kind: input, shape index: {}]
  %s3 = inlined_call_operand.vmem [shape: f32[128,32], index: 3, kind: input, shape index: {}]
  %s4 = inlined_call_operand.vmem [shape: f32[1,32], index: 4, kind: input, shape index: {}]
  %s5 = inlined_call_operand.vmem [shape: f32[1,32], index: 5, kind: input, shape index: {}]
  %s6 = inlined_call_operand.vmem [shape: f32[1,32], index: 6, kind: input, shape index: {}]
  %s7 = inlined_call_operand.hbm [shape: f32[16,32], index: 7, kind: output, shape index: {}]
  %s8 = sld [smem:[#allocation0]]
  $region73: #{feed_forward.1} parent=0
    _
  %s10 = ssub.s32 1, %s8
  %s11 = scalar_select 0, %s10, %s8
  $region1: #{feed_forward.1} parent=0
    #allocation2 [shape = 'u8[8192]{0}', space=vmem, size = 0x2000, scoped, tag = 'output window, operand 0']
    #allocation3 [shape = 's32[2]{0}', space=sflag, size = 0x8, scoped, tag = 'scoped memory for feed_forward.1']
    %12 = vsyncpa [#allocation3], 0
    %s13 = scalar_lea.sflag [#allocation3], 1
    %14 = vsyncpa %s13, 0
    loop: start=0, step=1, limit=4
    $region2: #{feed_forward.1} parent=1 // loop_pre_header
      _
    $region3: #{feed_forward.1} parent=1 // loop_header
      %s16 = sphi 0, %s20
      %p17 = scmp.ge.s32.totalorder %s16, 4
      %s23 = sphi 0, %s35
      %s24 = sphi 0, %s31
      %s25 = sphi 0, %s23
      %s26 = sphi 0, %s24
      %s27 = sphi 0, %s25
      %s28 = sphi 0, %s26
      %s38 = sphi 0, %s40
      %s41 = sphi 0, %s38
      %s42 = sphi 0, %s41
      %s58 = sphi 0, %s42
      %s64 = sphi 0, %s66
      %s67 = sphi 0, %s64
      %s68 = sphi 0, %s67
      %s84 = sphi 0, %s68
      %s90 = sphi 0, %s92
      %s93 = sphi 0, %s90
      %s94 = sphi 0, %s93
      %s110 = sphi 0, %s94
      %s116 = sphi 0, %s118
      %s119 = sphi 0, %s116
      %s120 = sphi 0, %s119
      %s136 = sphi 0, %s120
      %s140 = sphi 0, %s140
      %s142 = sphi 0, %s140
      %s143 = sphi 0, %s142
      %s157 = sphi 0, %s143
      %s161 = sphi 0, %s161
      %s163 = sphi 0, %s161
      %s164 = sphi 0, %s163
      %s178 = sphi 0, %s164
      %s182 = sphi 0, %s182
      %s184 = sphi 0, %s182
      %s185 = sphi 0, %s184
      %s199 = sphi 0, %s185
      %s205 = sphi 0, %s207
      %s208 = sphi 0, %s205
      %s209 = sphi 0, %s208
      %s225 = sphi 0, %s209
    $region4: #{feed_forward.1} parent=1 // loop_header_branch
      %19 = sbr.rel (%p17) target = $region8
    $region5: #{feed_forward.1} parent=1 // loop_body
      %s21 = ssub.s32 %s16, 1
      %s22 = ssub.s32 %s16, 2
      %s29 = sadd.s32 1, %s24
      %p30 = scmp.ge.s32.totalorder %s29, 1
      %s31 = scalar_select %p30, 0, %s29
      %s32 = sadd.s32 1, %s23
      %s33 = scalar_select %p30, %s32, %s23
      %p34 = scmp.ge.s32.totalorder %s33, 2
      %s35 = scalar_select %p34, 0, %s33
      %s36 = ssub.s32 %s23, %s35
      %p37 = scmp.eq.s32.totalorder %s36, 0
      %s39 = sadd.s32 %s38, 1
      %s40 = scalar_select %p37, %s38, %s39
      %p43 = pneg %p37
      %p44 = scmp.eq.s32.totalorder %s16, 1
      %p45 = por %p43, %p44
      %p46 = scmp.ne.s32.totalorder %s38, %s41
      %p47 = scmp.eq.s32.totalorder %s16, 0
      %p48 = por %p46, %p47
      %p49 = scmp.ne.s32.totalorder %s38, %s41
      %p50 = scmp.eq.s32.totalorder %s21, 1
      %p51 = por %p49, %p50
      %p52 = scmp.ne.s32.totalorder %s41, %s42
      %p53 = scmp.eq.s32.totalorder %s21, 0
      %p54 = por %p52, %p53
      %p55 = scmp.ne.s32.totalorder %s41, %s42
      %p56 = scmp.eq.s32.totalorder %s22, 1
      %p57 = por %p55, %p56
      %p59 = scmp.ne.s32.totalorder %s42, %s58
      %p60 = scmp.eq.s32.totalorder %s22, 0
      %p61 = por %p59, %p60
      %s62 = ssub.s32 %s24, %s31
      %p63 = scmp.eq.s32.totalorder %s62, 0
      %s65 = sadd.s32 %s64, 1
      %s66 = scalar_select %p63, %s64, %s65
      %p69 = pneg %p63
      %p70 = scmp.eq.s32.totalorder %s16, 1
      %p71 = por %p69, %p70
      %p72 = scmp.ne.s32.totalorder %s64, %s67
      %p73 = scmp.eq.s32.totalorder %s16, 0
      %p74 = por %p72, %p73
      %p75 = scmp.ne.s32.totalorder %s64, %s67
      %p76 = scmp.eq.s32.totalorder %s21, 1
      %p77 = por %p75, %p76
      %p78 = scmp.ne.s32.totalorder %s67, %s68
      %p79 = scmp.eq.s32.totalorder %s21, 0
      %p80 = por %p78, %p79
      %p81 = scmp.ne.s32.totalorder %s67, %s68
      %p82 = scmp.eq.s32.totalorder %s22, 1
      %p83 = por %p81, %p82
      %p85 = scmp.ne.s32.totalorder %s68, %s84
      %p86 = scmp.eq.s32.totalorder %s22, 0
      %p87 = por %p85, %p86
      %s88 = ssub.s32 %s24, %s31
      %p89 = scmp.eq.s32.totalorder %s88, 0
      %s91 = sadd.s32 %s90, 1
      %s92 = scalar_select %p89, %s90, %s91
      %p95 = pneg %p89
      %p96 = scmp.eq.s32.totalorder %s16, 1
      %p97 = por %p95, %p96
      %p98 = scmp.ne.s32.totalorder %s90, %s93
      %p99 = scmp.eq.s32.totalorder %s16, 0
      %p100 = por %p98, %p99
      %p101 = scmp.ne.s32.totalorder %s90, %s93
      %p102 = scmp.eq.s32.totalorder %s21, 1
      %p103 = por %p101, %p102
      %p104 = scmp.ne.s32.totalorder %s93, %s94
      %p105 = scmp.eq.s32.totalorder %s21, 0
      %p106 = por %p104, %p105
      %p107 = scmp.ne.s32.totalorder %s93, %s94
      %p108 = scmp.eq.s32.totalorder %s22, 1
      %p109 = por %p107, %p108
      %p111 = scmp.ne.s32.totalorder %s94, %s110
      %p112 = scmp.eq.s32.totalorder %s22, 0
      %p113 = por %p111, %p112
      %s114 = ssub.s32 %s24, %s31
      %p115 = scmp.eq.s32.totalorder %s114, 0
      %s117 = sadd.s32 %s116, 1
      %s118 = scalar_select %p115, %s116, %s117
      %p121 = pneg %p115
      %p122 = scmp.eq.s32.totalorder %s16, 1
      %p123 = por %p121, %p122
      %p124 = scmp.ne.s32.totalorder %s116, %s119
      %p125 = scmp.eq.s32.totalorder %s16, 0
      %p126 = por %p124, %p125
      %p127 = scmp.ne.s32.totalorder %s116, %s119
      %p128 = scmp.eq.s32.totalorder %s21, 1
      %p129 = por %p127, %p128
      %p130 = scmp.ne.s32.totalorder %s119, %s120
      %p131 = scmp.eq.s32.totalorder %s21, 0
      %p132 = por %p130, %p131
      %p133 = scmp.ne.s32.totalorder %s119, %s120
      %p134 = scmp.eq.s32.totalorder %s22, 1
      %p135 = por %p133, %p134
      %p137 = scmp.ne.s32.totalorder %s120, %s136
      %p138 = scmp.eq.s32.totalorder %s22, 0
      %p139 = por %p137, %p138
      %s141 = sadd.s32 %s140, 1
      %p144 = scmp.eq.s32.totalorder %s16, 1
      %p145 = scmp.ne.s32.totalorder %s140, %s142
      %p146 = scmp.eq.s32.totalorder %s16, 0
      %p147 = por %p145, %p146
      %p148 = scmp.ne.s32.totalorder %s140, %s142
      %p149 = scmp.eq.s32.totalorder %s21, 1
      %p150 = por %p148, %p149
      %p151 = scmp.ne.s32.totalorder %s142, %s143
      %p152 = scmp.eq.s32.totalorder %s21, 0
      %p153 = por %p151, %p152
      %p154 = scmp.ne.s32.totalorder %s142, %s143
      %p155 = scmp.eq.s32.totalorder %s22, 1
      %p156 = por %p154, %p155
      %p158 = scmp.ne.s32.totalorder %s143, %s157
      %p159 = scmp.eq.s32.totalorder %s22, 0
      %p160 = por %p158, %p159
      %s162 = sadd.s32 %s161, 1
      %p165 = scmp.eq.s32.totalorder %s16, 1
      %p166 = scmp.ne.s32.totalorder %s161, %s163
      %p167 = scmp.eq.s32.totalorder %s16, 0
      %p168 = por %p166, %p167
      %p169 = scmp.ne.s32.totalorder %s161, %s163
      %p170 = scmp.eq.s32.totalorder %s21, 1
      %p171 = por %p169, %p170
      %p172 = scmp.ne.s32.totalorder %s163, %s164
      %p173 = scmp.eq.s32.totalorder %s21, 0
      %p174 = por %p172, %p173
      %p175 = scmp.ne.s32.totalorder %s163, %s164
      %p176 = scmp.eq.s32.totalorder %s22, 1
      %p177 = por %p175, %p176
      %p179 = scmp.ne.s32.totalorder %s164, %s178
      %p180 = scmp.eq.s32.totalorder %s22, 0
      %p181 = por %p179, %p180
      %s183 = sadd.s32 %s182, 1
      %p186 = scmp.eq.s32.totalorder %s16, 1
      %p187 = scmp.ne.s32.totalorder %s182, %s184
      %p188 = scmp.eq.s32.totalorder %s16, 0
      %p189 = por %p187, %p188
      %p190 = scmp.ne.s32.totalorder %s182, %s184
      %p191 = scmp.eq.s32.totalorder %s21, 1
      %p192 = por %p190, %p191
      %p193 = scmp.ne.s32.totalorder %s184, %s185
      %p194 = scmp.eq.s32.totalorder %s21, 0
      %p195 = por %p193, %p194
      %p196 = scmp.ne.s32.totalorder %s184, %s185
      %p197 = scmp.eq.s32.totalorder %s22, 1
      %p198 = por %p196, %p197
      %p200 = scmp.ne.s32.totalorder %s185, %s199
      %p201 = scmp.eq.s32.totalorder %s22, 0
      %p202 = por %p200, %p201
      %s203 = ssub.s32 %s23, %s35
      %p204 = scmp.eq.s32.totalorder %s203, 0
      %s206 = sadd.s32 %s205, 1
      %s207 = scalar_select %p204, %s205, %s206
      %p210 = pneg %p204
      %p211 = scmp.eq.s32.totalorder %s16, 1
      %p212 = por %p210, %p211
      %p213 = scmp.ne.s32.totalorder %s205, %s208
      %p214 = scmp.eq.s32.totalorder %s16, 0
      %p215 = por %p213, %p214
      %p216 = scmp.ne.s32.totalorder %s205, %s208
      %p217 = scmp.eq.s32.totalorder %s21, 1
      %p218 = por %p216, %p217
      %p219 = scmp.ne.s32.totalorder %s208, %s209
      %p220 = scmp.eq.s32.totalorder %s21, 0
      %p221 = por %p219, %p220
      %p222 = scmp.ne.s32.totalorder %s208, %s209
      %p223 = scmp.eq.s32.totalorder %s22, 1
      %p224 = por %p222, %p223
      %p226 = scmp.ne.s32.totalorder %s209, %s225
      %p227 = scmp.eq.s32.totalorder %s22, 0
      %p228 = por %p226, %p227
      %p229 = scmp.le.s32.totalorder 1, %s16
      %p230 = scmp.lt.s32.totalorder %s16, 3
      %p231 = pnand %p229, %p230
      %p232 = pneg %p231
      // Predicated region
      $region9: #{feed_forward.1} parent=5 // pred_check
        _
      $region10: #{feed_forward.1} parent=5 // pred_check_branch
        %234 = sbr.rel (%p231) target = $region12
      $region11: #{feed_forward.1} parent=5 // pred_region
        %s235 = ssub.s32 %s16, 1
        // Predicated region
        $region13: #{feed_forward.1} parent=11 // pred_check
          %p236 = pneg %p80
        $region14: #{feed_forward.1} parent=11 // pred_check_branch
          %238 = sbr.rel (%p236) target = $region16
        $region15: #{feed_forward.1} parent=11 // pred_region
          %p239 = scmp.lt.s32.totalorder %s26, 0
          %s240 = scalar_select %p239, %s26, 0
          %s241 = smul.addr %s240, 8
          %s242 = scalar_lea.vmem %s1, %s241
        $region16: #{feed_forward.1} parent=11 // pred_fallthru
          _
        // Predicated region
        $region17: #{feed_forward.1} parent=11 // pred_check
          %p243 = pneg %p106
        $region18: #{feed_forward.1} parent=11 // pred_check_branch
          %245 = sbr.rel (%p243) target = $region20
        $region19: #{feed_forward.1} parent=11 // pred_region
          %p246 = scmp.lt.s32.totalorder %s26, 0
          %s247 = scalar_select %p246, %s26, 0
          %s248 = scalar_lea.vmem %s2, %s247
        $region20: #{feed_forward.1} parent=11 // pred_fallthru
          _
        // Predicated region
        $region21: #{feed_forward.1} parent=11 // pred_check
          %p249 = pneg %p132
        $region22: #{feed_forward.1} parent=11 // pred_check_branch
          %251 = sbr.rel (%p249) target = $region24
        $region23: #{feed_forward.1} parent=11 // pred_region
          %s252 = smul.u32 16, %s26
          %p253 = scmp.lt.s32.totalorder %s252, 15
          %s254 = scalar_select %p253, %s252, 15
          %s255 = smul.addr %s254, 8
          %s256 = scalar_lea.vmem %s3, %s255
          %s257 = smul.u32 16, %s26
        $region24: #{feed_forward.1} parent=11 // pred_fallthru
          _
        // Predicated region
        $region25: #{feed_forward.1} parent=11 // pred_check
          %p258 = pneg %p153
        $region26: #{feed_forward.1} parent=11 // pred_check_branch
          %260 = sbr.rel (%p258) target = $region28
        $region27: #{feed_forward.1} parent=11 // pred_region
          _
        $region28: #{feed_forward.1} parent=11 // pred_fallthru
          _
        // Predicated region
        $region29: #{feed_forward.1} parent=11 // pred_check
          %p261 = pneg %p174
        $region30: #{feed_forward.1} parent=11 // pred_check_branch
          %263 = sbr.rel (%p261) target = $region32
        $region31: #{feed_forward.1} parent=11 // pred_region
          _
        $region32: #{feed_forward.1} parent=11 // pred_fallthru
          _
        // Predicated region
        $region33: #{feed_forward.1} parent=11 // pred_check
          %p264 = pneg %p195
        $region34: #{feed_forward.1} parent=11 // pred_check_branch
          %266 = sbr.rel (%p264) target = $region36
        $region35: #{feed_forward.1} parent=11 // pred_region
          _
        $region36: #{feed_forward.1} parent=11 // pred_fallthru
          _
      $region12: #{feed_forward.1} parent=5 // pred_fallthru
        _
      %p267 = scmp.lt.s32.totalorder %s16, 2
      // Predicated region
      $region37: #{feed_forward.1} parent=5 // pred_check
        %p268 = pneg %p267
      $region38: #{feed_forward.1} parent=5 // pred_check_branch
        %270 = sbr.rel (%p268) target = $region40
      $region39: #{feed_forward.1} parent=5 // pred_region
        // Predicated region
        $region41: #{feed_forward.1} parent=39 // pred_check
          %p271 = pneg %p48
        $region42: #{feed_forward.1} parent=39 // pred_check_branch
          %273 = sbr.rel (%p271) target = $region44
        $region43: #{feed_forward.1} parent=39 // pred_region
          %p274 = scmp.lt.s32.totalorder %s23, 1
          %s275 = scalar_select %p274, %s23, 1
          %s276 = smul.addr %s275, 8
          %s277 = scalar_lea.vmem %s0, %s276
        $region44: #{feed_forward.1} parent=39 // pred_fallthru
          _
      $region40: #{feed_forward.1} parent=5 // pred_fallthru
        _
      %p278 = scmp.le.s32.totalorder 1, %s16
      %p279 = scmp.lt.s32.totalorder %s16, 3
      %p280 = pnand %p278, %p279
      %p281 = pneg %p280
      // Predicated region
      $region45: #{feed_forward.1} parent=5 // pred_check
        _
      $region46: #{feed_forward.1} parent=5 // pred_check_branch
        %283 = sbr.rel (%p280) target = $region48
      $region47: #{feed_forward.1} parent=5 // pred_region
        %s284 = ssub.s32 %s16, 1
        %p285 = scmp.lt.s32.totalorder %s25, 1
        %s286 = scalar_select %p285, %s25, 1
        %s287 = smul.addr %s286, 8
        %s288 = scalar_lea.vmem %s0, %s287
        %p289 = pneg %p54
        %p290 = pneg %p51
        %p291 = scmp.lt.s32.totalorder %s26, 0
        %s292 = scalar_select %p291, %s26, 0
        %s293 = smul.addr %s292, 8
        %s294 = scalar_lea.vmem %s1, %s293
        %p295 = pneg %p80
        %p296 = pneg %p77
        %p297 = scmp.lt.s32.totalorder %s26, 0
        %s298 = scalar_select %p297, %s26, 0
        %s299 = scalar_lea.vmem %s2, %s298
        %p300 = pneg %p106
        %p301 = pneg %p103
        %s302 = smul.u32 16, %s26
        %p303 = scmp.lt.s32.totalorder %s302, 15
        %s304 = scalar_select %p303, %s302, 15
        %s305 = smul.addr %s304, 8
        %s306 = scalar_lea.vmem %s3, %s305
        %p307 = pneg %p132
        %p308 = pneg %p129
        %p309 = pneg %p153
        %p310 = pneg %p150
        %p311 = pneg %p174
        %p312 = pneg %p171
        %p313 = pneg %p195
        %p314 = pneg %p192
        %p315 = pneg %p221
        %p316 = pneg %p218
        %s317 = sand.u32 %s208, 1
        %s318 = scalar_lea.sflag [#allocation3], %s317
        %s319 = sand.u32 %s208, 1
        %s320 = smul.addr %s319, 8
        %s321 = scalar_lea.vmem [#allocation2], %s320
        %p322 = scmp.lt.s32.totalorder %s25, 1
        %s323 = scalar_select %p322, %s25, 1
        %s324 = smul.addr %s323, 8
        %s325 = scalar_lea.vmem %s0, %s324
        %p326 = scmp.lt.s32.totalorder %s26, 0
        %s327 = scalar_select %p326, %s26, 0
        %s328 = smul.addr %s327, 8
        %s329 = scalar_lea.vmem %s1, %s328
        %p330 = scmp.lt.s32.totalorder %s26, 0
        %s331 = scalar_select %p330, %s26, 0
        %s332 = scalar_lea.vmem %s2, %s331
        %s333 = smul.u32 16, %s26
        %p334 = scmp.lt.s32.totalorder %s333, 15
        %s335 = scalar_select %p334, %s333, 15
        %s336 = smul.addr %s335, 8
        %s337 = scalar_lea.vmem %s3, %s336
        %s338 = smul.u32 16, %s26
        %v339 = vld [vmem:[%s325] sm:$0xff]
        %v340 = vld [vmem:[%s329] sm:$0xff]
        %v341 = vld [vmem:[%s329 + $0x8] sm:$0xff]
        %v342 = vld [vmem:[%s329 + $0x10] sm:$0xff]
        %v343 = vld [vmem:[%s329 + $0x18] sm:$0xff]
        %v344 = vld [vmem:[%s332] sm:$0x1]
        %v346 = vperm.slane %v344, 0
        %vm348 = vcmask 261120
        %v350 = vsel %vm348, %v339, 0
        %352 = vmatpush.msra.mxu0 0.0
        %353 = vmatpush.msra.mxu0 0.0
        %354 = vmatpush.msra.mxu0 0.0
        %355 = vmatpush.msra.mxu0 0.0
        %356 = vmatpush.msra.mxu0 0.0
        %357 = vmatpush.msra.mxu0 0.0
        %358 = vmatpush.msra.mxu0 0.0
        %359 = vmatpush.msra.mxu0 0.0
        %360 = vmatpush.msra.mxu0 0.0
        %361 = vmatpush.msra.mxu0 0.0
        %362 = vmatpush.msra.mxu0 0.0
        %363 = vmatpush.msra.mxu0 0.0
        %364 = vmatpush.msra.mxu0 %v343
        %365 = vmatpush.msra.mxu0 %v342
        %366 = vmatpush.msra.mxu0 %v341
        %367 = vmatpush.msra.mxu0 %v340
        %368 = vmatmul.f32.gmra.mxu0 %v350
        %v369 = vpop.f32.mrf.mxu0
        %v370 = vadd.f32 %v346, %v369
        %371 = vdwg.mxu0
        %v372 = vmax.f32 %v370, 0.0
        %v373 = vld [vmem:[%s337] sm:$0xff]
        %v374 = vld [vmem:[%s337 + $0x8] sm:$0xff]
        %v375 = vld [vmem:[%s337 + $0x10] sm:$0xff]
        %v376 = vld [vmem:[%s337 + $0x18] sm:$0xff]
        %v377 = vld [vmem:[%s337 + $0x20] sm:$0xff]
        %v378 = vld [vmem:[%s337 + $0x28] sm:$0xff]
        %v379 = vld [vmem:[%s337 + $0x30] sm:$0xff]
        %v380 = vld [vmem:[%s337 + $0x38] sm:$0xff]
        %v381 = vld [vmem:[%s337 + $0x40] sm:$0xff]
        %v382 = vld [vmem:[%s337 + $0x48] sm:$0xff]
        %v383 = vld [vmem:[%s337 + $0x50] sm:$0xff]
        %v384 = vld [vmem:[%s337 + $0x58] sm:$0xff]
        %v385 = vld [vmem:[%s337 + $0x60] sm:$0xff]
        %v386 = vld [vmem:[%s337 + $0x68] sm:$0xff]
        %v387 = vld [vmem:[%s337 + $0x70] sm:$0xff]
        %v388 = vld [vmem:[%s337 + $0x78] sm:$0xff]
        %389 = vmatpush.msra.mxu0 %v388
        %390 = vmatpush.msra.mxu0 %v387
        %391 = vmatpush.msra.mxu0 %v386
        %392 = vmatpush.msra.mxu0 %v385
        %393 = vmatpush.msra.mxu0 %v384
        %394 = vmatpush.msra.mxu0 %v383
        %395 = vmatpush.msra.mxu0 %v382
        %396 = vmatpush.msra.mxu0 %v381
        %397 = vmatpush.msra.mxu0 %v380
        %398 = vmatpush.msra.mxu0 %v379
        %399 = vmatpush.msra.mxu0 %v378
        %400 = vmatpush.msra.mxu0 %v377
        %401 = vmatpush.msra.mxu0 %v376
        %402 = vmatpush.msra.mxu0 %v375
        %403 = vmatpush.msra.mxu0 %v374
        %404 = vmatpush.msra.mxu0 %v373
        %405 = vmatmul.f32.gmra.mxu0 %v372
        %v406 = vpop.f32.mrf.mxu0
        %v407 = vadd.f32 0.0, %v406
        %408 = vdwg.mxu0
        %p409 = scmp.eq.s32.totalorder %s26, 0
        // Predicated region
        $region49: #{feed_forward.1} parent=47 // pred_check
          %p410 = pneg %p409
        $region50: #{feed_forward.1} parent=47 // pred_check_branch
          %412 = sbr.rel (%p410) target = $region52
        $region51: #{feed_forward.1} parent=47 // pred_region
          %413 = vst.msk [vmem:[%s321] sm:$0xff] %vm348, %v407
        $region52: #{feed_forward.1} parent=47 // pred_fallthru
          _
        %p414 = scmp.gt.s32.totalorder %s26, 0
        // Predicated region
        $region53: #{feed_forward.1} parent=47 // pred_check
          %p415 = pneg %p414
        $region54: #{feed_forward.1} parent=47 // pred_check_branch
          %417 = sbr.rel (%p415) target = $region56
        $region55: #{feed_forward.1} parent=47 // pred_region
          %v418 = vld [vmem:[%s321] sm:$0xff]
          %v419 = vadd.f32 %v418, %v407
          %420 = vst.msk [vmem:[%s321] sm:$0xff] %vm348, %v419
        $region56: #{feed_forward.1} parent=47 // pred_fallthru
          _
        // Predicated region
        $region57: #{feed_forward.1} parent=47 // pred_check
          %p421 = pneg %p409
        $region58: #{feed_forward.1} parent=47 // pred_check_branch
          %423 = sbr.rel (%p421) target = $region60
        $region59: #{feed_forward.1} parent=47 // pred_region
          %v424 = vld [vmem:[%s321] sm:$0xff]
          %v425 = vld [vmem:[%s4] sm:$0x1]
          %v427 = vperm.slane %v425, 0
          %v429 = vadd.f32 %v424, %v427
          %v430 = vld [vmem:[%s325] sm:$0xff]
          %v431 = vadd.f32 %v429, %v430
          %v432 = vsel %vm348, %v431, 0.0
          %433 = vadd.xlane.f32.xlu0 %v432
          %v434 = vpop.xlane.xlu0 %433
          %v435 = vrcp.pop 32.0
          %v436 = vmul.f32 32.0, %v435
          %v437 = vsub.f32 1.0, %v436
          %v438 = vmul.f32 %v435, %v437
          %v439 = vadd.f32 %v435, %v438
          %vm440 = vweird.f32 %v435
          %v441 = vsel %vm440, %v435, %v439
          %v442 = vmul.f32 %v434, %v441
          %v443 = vsub.f32 %v431, %v442
          %v444 = vmul.f32 %v443, %v443
          %v445 = vsel %vm348, %v444, 0.0
          %446 = vadd.xlane.f32.xlu0 %v445
          %v447 = vpop.xlane.xlu0 %446
          %v448 = vmul.f32 %v447, %v441
          %v449 = vadd.f32 %v448, 1e-08
          %v450 = vrsqrt.pop %v449
          %v451 = vmul.f32 %v450, %v449
          %v452 = vmul.f32 %v451, %v450
          %v453 = vmul.f32 0.5, %v452
          %v454 = vsub.f32 1.5, %v453
          %v455 = vmul.f32 %v450, %v454
          %vm456 = vweird.f32 %v449
          %vm457 = vweird.f32 %v450
          %vm458 = vmor %vm456, %vm457
          %v459 = vsel %vm458, %v450, %v455
          %v460 = vmul.f32 %v443, %v459
          %v461 = vld [vmem:[%s5] sm:$0x1]
          %v463 = vperm.slane %v461, 0
          %v465 = vmul.f32 %v460, %v463
          %v466 = vld [vmem:[%s6] sm:$0x1]
          %v468 = vperm.slane %v466, 0
          %v470 = vadd.f32 %v465, %v468
          %471 = vst.msk [vmem:[%s321] sm:$0xff] %vm348, %v470
        $region60: #{feed_forward.1} parent=47 // pred_fallthru
          _
        %s472 = sand.u32 %s208, 1
        %s473 = scalar_lea.sflag [#allocation3], %s472
        %s474 = sand.u32 %s208, 1
        %s475 = smul.addr %s474, 8
        %s476 = scalar_lea.vmem [#allocation2], %s475
        // Predicated region
        $region61: #{feed_forward.1} parent=47 // pred_check
          %p477 = pneg %p218
        $region62: #{feed_forward.1} parent=47 // pred_check_branch
          %479 = sbr.rel (%p477) target = $region64
        $region63: #{feed_forward.1} parent=47 // pred_region
          %481 = vsyncadd %s473, 0
          %s482 = smul.addr %s25, 8
          %s483 = scalar_lea.hbm %s7, %s482
          %s485 = sshll.u32 %s476, 4
          %s486 = int_to_ptr.vmem [resolvable:$true] %s485
          %s487 = sshll.u32 %s483, 4
          %s488 = int_to_ptr.hbm [resolvable:$true] %s487
          %490 = dma.vmem_to_hbm [thread:$0]  %s486, 128, %s488, %s473
        $region64: #{feed_forward.1} parent=47 // pred_fallthru
          _
      $region48: #{feed_forward.1} parent=5 // pred_fallthru
        _
      %p491 = scmp.le.s32.totalorder 2, %s16
      // Predicated region
      $region65: #{feed_forward.1} parent=5 // pred_check
        %p492 = pneg %p491
      $region66: #{feed_forward.1} parent=5 // pred_check_branch
        %494 = sbr.rel (%p492) target = $region68
      $region67: #{feed_forward.1} parent=5 // pred_region
        %s495 = ssub.s32 %s16, 2
        // Predicated region
        $region69: #{feed_forward.1} parent=67 // pred_check
          %p496 = pneg %p224
        $region70: #{feed_forward.1} parent=67 // pred_check_branch
          %498 = sbr.rel (%p496) target = $region72
        $region71: #{feed_forward.1} parent=67 // pred_region
          %s499 = sand.u32 %s209, 1
          %s500 = scalar_lea.sflag [#allocation3], %s499
          %s501 = sand.u32 %s209, 1
          %s502 = smul.addr %s501, 8
          %s503 = scalar_lea.vmem [#allocation2], %s502
          %505 = dma.done %s500, 128
        $region72: #{feed_forward.1} parent=67 // pred_fallthru
          _
      $region68: #{feed_forward.1} parent=5 // pred_fallthru
        _
    $region6: #{feed_forward.1} parent=1 // loop_footer
      %s20 = sadd.s32 1, %s16
    $region7: #{feed_forward.1} parent=1 // loop_footer_branch
      %15 = sbr.rel target = $region3
    $region8: #{feed_forward.1} parent=1 // loop_exit
      _
    %506 = vsyncpa [#allocation3], 1
    %s507 = scalar_lea.sflag [#allocation3], 1
    %508 = vsyncpa %s507, 1

</llo_original>
